<compile_context>
chip_gen: v7x
topology: tpu7x:2x2x1
jax: 0.10.0
libtpu: 0.0.40
codegen_flags: <defaults>
</compile_context>

<pallas_src>
import functools
import math

import jax
import jax.numpy as jnp
from jax.experimental import pallas as pl
from jax.experimental.pallas import tpu as pltpu


def _round_up(a, b):
    return (a + b - 1) // b * b


def _label_smoothing_kernel(tgt_ref, x_ref, *refs, size, padding_idx, confidence,
                            smooth_val, row_const, tv, check_col_bound, with_td):
    # tgt_ref : (tm, 1)   int32   target class per row
    # x_ref   : (tm, tv)  x.dtype log-probabilities (one vocab chunk)
    # td_ref  : (tm, tv)  x.dtype smoothed target distribution (optional output)
    # loss_ref: (tm, 1)   f32     per-row loss (written once at the last vocab tile)
    # acc_ref : (tm, 128) f32     lane-dense per-row accumulator of td*x
    if with_td:
        td_ref, loss_ref, acc_ref = refs
    else:
        td_ref = None
        loss_ref, acc_ref = refs

    j = pl.program_id(1)
    nj = pl.num_programs(1)

    tgt = tgt_ref[...]                                   # (tm, 1) int32
    x = x_ref[...]                                       # (tm, tv) native dtype
    tm = x.shape[0]

    # Tile-local coordinates: shift the scalar/(tm,1) side instead of adding
    # j*tv to a full-width iota every step.
    col_base = j * tv
    tgt_local = tgt - col_base                           # (tm, 1)
    pad_local = padding_idx - col_base                   # scalar
    row_valid = tgt != padding_idx                       # (tm, 1) bool

    col = jax.lax.broadcasted_iota(jnp.int32, (tm, tv), 1)   # tile-local lanes
    is_target = col == tgt_local
    valid = row_valid & (col != pad_local)
    if check_col_bound:        # only needed when V is not a multiple of tv
        valid = valid & (col < (size - col_base))

    td = jnp.where(valid, jnp.where(is_target, confidence, smooth_val), 0.0)

    if with_td:
        td_ref[...] = td.astype(td_ref.dtype)

    # Guard against 0 * (+-inf) -> NaN (padding column with -inf log-prob, or
    # garbage OOB reads on ragged tiles): zero contribution wherever td == 0.
    nz = valid
    if confidence <= 0.0 or smooth_val <= 0.0:           # degenerate smoothing
        nz = nz & (td > 0.0)
    tdx = jnp.where(nz, td * x.astype(jnp.float32), 0.0)

    # Lane-dense fold: (tm, tv) -> (tm, 128) with plain vreg adds (lane-aligned
    # static slices, no cross-lane XLU work, no masked narrow stores per step).
    folds = tv // 128
    part = tdx[:, 0:128]
    for c in range(1, folds):
        part = part + tdx[:, c * 128:(c + 1) * 128]

    @pl.when(j == 0)
    def _():
        acc_ref[...] = jnp.zeros_like(acc_ref)

    acc_ref[...] += part

    @pl.when(j == nj - 1)
    def _():
        # loss_row = sum td*(log td - x) = [conf*log(conf) + smoothing*log(sv)] - sum td*x
        row_sum = jnp.sum(acc_ref[...], axis=1, keepdims=True)        # (tm, 1)
        rc = jnp.where(row_valid, row_const, 0.0)
        loss_ref[...] = (rc - row_sum).astype(loss_ref.dtype)


@functools.partial(jax.jit, static_argnames=("padding_idx", "smoothing", "tm", "tv",
                                             "return_true_dist"))
def label_smoothing(x, target, *, padding_idx, smoothing, tm=256, tv=2048,
                    return_true_dist=True):
    """x: [N, size] log-probs; target: [N] int class ids.

    Returns (loss_scalar, true_dist[N, size]) or just loss_scalar when
    return_true_dist=False (saves half the HBM traffic).
    """
    N, V = x.shape
    confidence = 1.0 - smoothing
    smooth_val = smoothing / (V - 2)    # NOTE: V <= 2 divides by zero, as in PyTorch
    log_conf = math.log(confidence) if confidence > 0.0 else 0.0
    log_smooth = math.log(smooth_val) if smooth_val > 0.0 else 0.0
    # Per-valid-row constant: sum td*log(td) = conf*log(conf) + (V-2)*sv*log(sv).
    row_const = confidence * log_conf + smoothing * log_smooth

    # Tile sizing: keep (8,128) alignment, clamp to problem size, and make sure the
    # "parallel" row axis has >= 2 tiles so both v7x TensorCores get work.
    tm = min(tm, _round_up(N, 8))
    tv = min(tv, _round_up(V, 128))
    if pl.cdiv(N, tm) < 2 and tm > 8:
        tm = _round_up(pl.cdiv(N, 2), 8)
    grid = (pl.cdiv(N, tm), pl.cdiv(V, tv))
    check_col_bound = (V % tv) != 0

    tgt2d = target.astype(jnp.int32).reshape(N, 1)

    kernel = functools.partial(
        _label_smoothing_kernel,
        size=V, padding_idx=padding_idx, confidence=confidence,
        smooth_val=smooth_val, row_const=row_const, tv=tv,
        check_col_bound=check_col_bound, with_td=return_true_dist)

    if return_true_dist:
        out_shape = (jax.ShapeDtypeStruct((N, V), x.dtype),
                     jax.ShapeDtypeStruct((N, 1), jnp.float32))
        out_specs = [pl.BlockSpec((tm, tv), lambda i, j: (i, j)),   # true_dist chunk
                     pl.BlockSpec((tm, 1), lambda i, j: (i, 0))]    # per-row loss
    else:
        out_shape = jax.ShapeDtypeStruct((N, 1), jnp.float32)
        out_specs = pl.BlockSpec((tm, 1), lambda i, j: (i, 0))

    out = pl.pallas_call(
        kernel,
        out_shape=out_shape,
        grid_spec=pltpu.PrefetchScalarGridSpec(
            num_scalar_prefetch=0,
            grid=grid,
            in_specs=[
                pl.BlockSpec((tm, 1), lambda i, j: (i, 0)),    # targets
                pl.BlockSpec((tm, tv), lambda i, j: (i, j)),   # x chunk
            ],
            out_specs=out_specs,
            scratch_shapes=[pltpu.VMEM((tm, 128), jnp.float32)],
        ),
        compiler_params=pltpu.CompilerParams(
            dimension_semantics=("parallel", "arbitrary"),
            vmem_limit_bytes=32 * 1024 * 1024,
        ),
    )(tgt2d, x)

    if return_true_dist:
        td, row_loss = out
        return jnp.sum(row_loss), td
    row_loss = out
    return jnp.sum(row_loss)


def _ref_label_smoothing(x, target, padding_idx, smoothing):
    """Pure-JAX reference mirroring the PyTorch module."""
    N, V = x.shape
    confidence = 1.0 - smoothing
    smooth_val = smoothing / (V - 2)
    td = jnp.full((N, V), smooth_val, jnp.float32)
    td = td.at[jnp.arange(N), target].set(confidence)
    td = td.at[:, padding_idx].set(0.0)
    td = jnp.where((target == padding_idx)[:, None], 0.0, td)
    safe_log = jnp.log(jnp.where(td > 0, td, 1.0))
    loss = jnp.sum(jnp.where(td > 0, td * (safe_log - x), 0.0))
    return loss, td


if __name__ == "__main__":
    # Small shapes consistent with the module: x is [batch*seq, vocab_size].
    batch, seq, size = 4, 16, 128
    padding_idx, smoothing = 0, 0.1
    N = batch * seq

    key = jax.random.PRNGKey(0)
    kx, kt = jax.random.split(key)

    logits = jax.random.normal(kx, (N, size), jnp.float32)
    x = jax.nn.log_softmax(logits, axis=-1)               # KLDivLoss expects log-probs
    target = jax.random.randint(kt, (N,), 0, size, jnp.int32)
    target = target.at[::7].set(padding_idx)              # exercise padding rows

    loss, true_dist = label_smoothing(
        x, target, padding_idx=padding_idx, smoothing=smoothing)
    jax.block_until_ready((loss, true_dist))

    loss_only = label_smoothing(
        x, target, padding_idx=padding_idx, smoothing=smoothing,
        return_true_dist=False)
    jax.block_until_ready(loss_only)

    loss_ref, td_ref = _ref_label_smoothing(x, target, padding_idx, smoothing)

    assert true_dist.shape == (N, size)
    assert jnp.allclose(true_dist, td_ref, atol=1e-6, rtol=1e-6)
    assert jnp.allclose(loss, loss_ref, atol=1e-3, rtol=1e-5)
    assert jnp.allclose(loss_only, loss_ref, atol=1e-3, rtol=1e-5)

    print("KERNEL_OK")
</pallas_src>

<mosaic_0001>
module attributes {stable_mosaic.version = 11 : i64} {
  func.func @_label_smoothing_kernel(%arg0: i32, %arg1: i32, %arg2: memref<32x1xi32, #tpu.memory_space<vmem>>, %arg3: memref<32x128xf32, #tpu.memory_space<vmem>>, %arg4: memref<32x128xf32, #tpu.memory_space<vmem>>, %arg5: memref<32x1xf32, #tpu.memory_space<vmem>>, %arg6: memref<32x128xf32, #tpu.memory_space<vmem>>) attributes {dimension_semantics = [#tpu.dimension_semantics<parallel>, #tpu.dimension_semantics<arbitrary>], iteration_bounds = array<i64: 2, 1>, scalar_prefetch = 0 : i64, scratch_operands = 1 : i64, tpu.core_type = #tpu.core_type<tc>, window_params = [{transform_indices = @transform_0, window_bounds = array<i64: 32, 1>}, {transform_indices = @transform_1, window_bounds = array<i64: 32, 128>}, {transform_indices = @transform_2, window_bounds = array<i64: 32, 128>}, {transform_indices = @transform_3, window_bounds = array<i64: 32, 1>}]} {
    %c0 = arith.constant 0 : index
    %c0_0 = arith.constant 0 : index
    %0 = vector.load %arg2[%c0, %c0_0] : memref<32x1xi32, #tpu.memory_space<vmem>>, vector<32x1xi32>
    %c0_1 = arith.constant 0 : index
    %c0_2 = arith.constant 0 : index
    %1 = vector.load %arg3[%c0_1, %c0_2] : memref<32x128xf32, #tpu.memory_space<vmem>>, vector<32x128xf32>
    %c128_i32 = arith.constant 128 : i32
    %2 = arith.muli %arg1, %c128_i32 : i32
    %3 = vector.broadcast %2 : i32 to vector<32x1xi32>
    %4 = arith.subi %0, %3 : vector<32x1xi32>
    %c0_i32 = arith.constant 0 : i32
    %5 = arith.subi %c0_i32, %2 : i32
    %c0_i32_3 = arith.constant 0 : i32
    %6 = vector.broadcast %c0_i32_3 : i32 to vector<32x1xi32>
    %7 = arith.cmpi ne, %0, %6 : vector<32x1xi32>
    %8 = tpu.iota {dimensions = array<i32: 1>} : vector<32x128xi32>
    %9 = vector.broadcast %4 : vector<32x1xi32> to vector<32x128xi32>
    %10 = arith.cmpi eq, %8, %9 : vector<32x128xi32>
    %11 = vector.broadcast %5 : i32 to vector<32x128xi32>
    %12 = arith.cmpi ne, %8, %11 : vector<32x128xi32>
    %13 = vector.broadcast %7 : vector<32x1xi1> to vector<32x128xi1>
    %14 = arith.andi %13, %12 : vector<32x128xi1>
    %cst = arith.constant 0.899999976 : f32
    %cst_4 = arith.constant 7.93650805E-4 : f32
    %15 = vector.broadcast %cst : f32 to vector<32x128xf32>
    %16 = vector.broadcast %cst_4 : f32 to vector<32x128xf32>
    %17 = arith.select %10, %15, %16 : vector<32x128xi1>, vector<32x128xf32>
    %cst_5 = arith.constant 0.000000e+00 : f32
    %18 = vector.broadcast %cst_5 : f32 to vector<32x128xf32>
    %19 = arith.select %14, %17, %18 : vector<32x128xi1>, vector<32x128xf32>
    %c0_6 = arith.constant 0 : index
    %c0_7 = arith.constant 0 : index
    %20 = vector.load %arg4[%c0_6, %c0_7] : memref<32x128xf32, #tpu.memory_space<vmem>>, vector<32x128xf32>
    tpu.vector_store %arg4[%c0_6, %c0_7], %19 {strides = array<i32>} : memref<32x128xf32, #tpu.memory_space<vmem>>, vector<32x128xf32>,
    %21 = arith.mulf %19, %1 : vector<32x128xf32>
    %cst_8 = arith.constant 0.000000e+00 : f32
    %22 = vector.broadcast %cst_8 : f32 to vector<32x128xf32>
    %23 = arith.select %14, %21, %22 : vector<32x128xi1>, vector<32x128xf32>
    %c0_i32_9 = arith.constant 0 : i32
    %24 = arith.cmpi eq, %arg1, %c0_i32_9 : i32
    %25 = arith.extui %24 : i1 to i32
    %c0_i32_10 = arith.constant 0 : i32
    %26 = arith.cmpi ne, %25, %c0_i32_10 : i32
    scf.if %26 {
      %cst_17 = arith.constant 0.000000e+00 : f32
      %33 = vector.broadcast %cst_17 : f32 to vector<32x128xf32>
      %c0_18 = arith.constant 0 : index
      %c0_19 = arith.constant 0 : index
      %34 = vector.load %arg6[%c0_18, %c0_19] : memref<32x128xf32, #tpu.memory_space<vmem>>, vector<32x128xf32>
      tpu.vector_store %arg6[%c0_18, %c0_19], %33 {strides = array<i32>} : memref<32x128xf32, #tpu.memory_space<vmem>>, vector<32x128xf32>,
    } else {
    }
    %c0_11 = arith.constant 0 : index
    %c0_12 = arith.constant 0 : index
    %27 = vector.load %arg6[%c0_11, %c0_12] : memref<32x128xf32, #tpu.memory_space<vmem>>, vector<32x128xf32>
    %28 = arith.addf %27, %23 : vector<32x128xf32>
    %c0_13 = arith.constant 0 : index
    %c0_14 = arith.constant 0 : index
    %29 = vector.load %arg6[%c0_13, %c0_14] : memref<32x128xf32, #tpu.memory_space<vmem>>, vector<32x128xf32>
    tpu.vector_store %arg6[%c0_13, %c0_14], %28 {strides = array<i32>} : memref<32x128xf32, #tpu.memory_space<vmem>>, vector<32x128xf32>,
    %c0_i32_15 = arith.constant 0 : i32
    %30 = arith.cmpi eq, %arg1, %c0_i32_15 : i32
    %31 = arith.extui %30 : i1 to i32
    %c0_i32_16 = arith.constant 0 : i32
    %32 = arith.cmpi ne, %31, %c0_i32_16 : i32
    scf.if %32 {
      %c0_17 = arith.constant 0 : index
      %c0_18 = arith.constant 0 : index
      %33 = vector.load %arg6[%c0_17, %c0_18] : memref<32x128xf32, #tpu.memory_space<vmem>>, vector<32x128xf32>
      %cst_19 = arith.constant dense<0.000000e+00> : vector<32xf32>
      %34 = vector.multi_reduction <add>, %33, %cst_19 [1] : vector<32x128xf32> to vector<32xf32>
      %35 = vector.shape_cast %34 : vector<32xf32> to vector<32x1xf32>
      %cst_20 = arith.constant -0.808711171 : f32
      %cst_21 = arith.constant 0.000000e+00 : f32
      %36 = vector.broadcast %cst_20 : f32 to vector<32x1xf32>
      %37 = vector.broadcast %cst_21 : f32 to vector<32x1xf32>
      %38 = arith.select %7, %36, %37 : vector<32x1xi1>, vector<32x1xf32>
      %39 = arith.subf %38, %35 : vector<32x1xf32>
      %c0_22 = arith.constant 0 : index
      %c0_23 = arith.constant 0 : index
      %40 = vector.load %arg5[%c0_22, %c0_23] : memref<32x1xf32, #tpu.memory_space<vmem>>, vector<32x1xf32>
      tpu.vector_store %arg5[%c0_22, %c0_23], %39 {strides = array<i32>} : memref<32x1xf32, #tpu.memory_space<vmem>>, vector<32x1xf32>,
    } else {
    }
    return
  }
  func.func @transform_0(%arg0: i32, %arg1: i32) -> (i32, i32) {
    %c0_i32 = arith.constant 0 : i32
    %c0_i32_0 = arith.constant 0 : i32
    return %arg0, %c0_i32 : i32, i32
  }
  func.func @transform_1(%arg0: i32, %arg1: i32) -> (i32, i32) {
    %c0_i32 = arith.constant 0 : i32
    return %arg0, %arg1 : i32, i32
  }
  func.func @transform_2(%arg0: i32, %arg1: i32) -> (i32, i32) {
    %c0_i32 = arith.constant 0 : i32
    return %arg0, %arg1 : i32, i32
  }
  func.func @transform_3(%arg0: i32, %arg1: i32) -> (i32, i32) {
    %c0_i32 = arith.constant 0 : i32
    %c0_i32_0 = arith.constant 0 : i32
    return %arg0, %c0_i32 : i32, i32
  }
}

</mosaic_0001>

<llo_original>
// kernel: label_smoothing.1
$region0: #{label_smoothing.1}
  #allocation0 [shape = 'u32[]', space=smem, size = 0x4, offset = 0x4, fixed_abs, tag = 'smem constant byte address 0x4 - core index']
  #allocation1 [shape = 'u32[144,128]{1,0:T(1,128)}', space=vmem, size = 0x12000, scoped, tag = 'internal scratch']
  #allocation2 [shape = 'f32[32,128]{1,0:T(8,128)}', space=vmem, size = 0x4000, scoped, tag = 'scratch operand']
  %s0 = inlined_call_operand.vmem [shape: s32[64,1], index: 0, kind: input, shape index: {}]
  %s1 = inlined_call_operand.vmem [shape: f32[64,128], index: 1, kind: input, shape index: {}]
  %s2 = inlined_call_operand.hbm [shape: f32[64,128], index: 2, kind: output, shape index: {0}]
  %s3 = inlined_call_operand.vmem [shape: f32[64,1], index: 3, kind: output, shape index: {1}]
  %4 = xla_tuple %s2, %s3
  %s5 = sld [smem:[#allocation0]]
  $region57: #{label_smoothing.1} parent=0
    _
  %s7 = ssub.s32 1, %s5
  %s8 = scalar_select 0, %s7, %s5
  $region1: #{label_smoothing.1} parent=0
    #allocation3 [shape = 'u8[32768]{0}', space=vmem, size = 0x8000, scoped, tag = 'output window, operand 0']
    #allocation4 [shape = 's32[2]{0}', space=sflag, size = 0x8, scoped, tag = 'scoped memory for label_smoothing.1']
    %9 = vsyncpa [#allocation4], 0
    %s10 = scalar_lea.sflag [#allocation4], 1
    %11 = vsyncpa %s10, 0
    loop: start=0, step=1, limit=4
    $region2: #{label_smoothing.1} parent=1 // loop_pre_header
      _
    $region3: #{label_smoothing.1} parent=1 // loop_header
      %s13 = sphi 0, %s17
      %p14 = scmp.ge.s32.totalorder %s13, 4
      %s20 = sphi 0, %s32
      %s21 = sphi 0, %s28
      %s22 = sphi 0, %s20
      %s23 = sphi 0, %s21
      %s24 = sphi 0, %s22
      %s25 = sphi 0, %s23
      %s35 = sphi 0, %s37
      %s38 = sphi 0, %s35
      %s39 = sphi 0, %s38
      %s55 = sphi 0, %s39
      %s63 = sphi 0, %s65
      %s66 = sphi 0, %s63
      %s67 = sphi 0, %s66
      %s83 = sphi 0, %s67
      %s91 = sphi 0, %s93
      %s94 = sphi 0, %s91
      %s95 = sphi 0, %s94
      %s111 = sphi 0, %s95
      %s117 = sphi 0, %s119
      %s120 = sphi 0, %s117
      %s121 = sphi 0, %s120
      %s137 = sphi 0, %s121
    $region4: #{label_smoothing.1} parent=1 // loop_header_branch
      %16 = sbr.rel (%p14) target = $region8
    $region5: #{label_smoothing.1} parent=1 // loop_body
      %s18 = ssub.s32 %s13, 1
      %s19 = ssub.s32 %s13, 2
      %s26 = sadd.s32 1, %s21
      %p27 = scmp.ge.s32.totalorder %s26, 1
      %s28 = scalar_select %p27, 0, %s26
      %s29 = sadd.s32 1, %s20
      %s30 = scalar_select %p27, %s29, %s20
      %p31 = scmp.ge.s32.totalorder %s30, 2
      %s32 = scalar_select %p31, 0, %s30
      %s33 = ssub.s32 %s20, %s32
      %p34 = scmp.eq.s32.totalorder %s33, 0
      %s36 = sadd.s32 %s35, 1
      %s37 = scalar_select %p34, %s35, %s36
      %p40 = pneg %p34
      %p41 = scmp.eq.s32.totalorder %s13, 1
      %p42 = por %p40, %p41
      %p43 = scmp.ne.s32.totalorder %s35, %s38
      %p44 = scmp.eq.s32.totalorder %s13, 0
      %p45 = por %p43, %p44
      %p46 = scmp.ne.s32.totalorder %s35, %s38
      %p47 = scmp.eq.s32.totalorder %s18, 1
      %p48 = por %p46, %p47
      %p49 = scmp.ne.s32.totalorder %s38, %s39
      %p50 = scmp.eq.s32.totalorder %s18, 0
      %p51 = por %p49, %p50
      %p52 = scmp.ne.s32.totalorder %s38, %s39
      %p53 = scmp.eq.s32.totalorder %s19, 1
      %p54 = por %p52, %p53
      %p56 = scmp.ne.s32.totalorder %s39, %s55
      %p57 = scmp.eq.s32.totalorder %s19, 0
      %p58 = por %p56, %p57
      %s59 = ssub.s32 %s20, %s32
      %s60 = ssub.s32 %s21, %s28
      %s61 = sor.u32 %s59, %s60
      %p62 = scmp.eq.s32.totalorder %s61, 0
      %s64 = sadd.s32 %s63, 1
      %s65 = scalar_select %p62, %s63, %s64
      %p68 = pneg %p62
      %p69 = scmp.eq.s32.totalorder %s13, 1
      %p70 = por %p68, %p69
      %p71 = scmp.ne.s32.totalorder %s63, %s66
      %p72 = scmp.eq.s32.totalorder %s13, 0
      %p73 = por %p71, %p72
      %p74 = scmp.ne.s32.totalorder %s63, %s66
      %p75 = scmp.eq.s32.totalorder %s18, 1
      %p76 = por %p74, %p75
      %p77 = scmp.ne.s32.totalorder %s66, %s67
      %p78 = scmp.eq.s32.totalorder %s18, 0
      %p79 = por %p77, %p78
      %p80 = scmp.ne.s32.totalorder %s66, %s67
      %p81 = scmp.eq.s32.totalorder %s19, 1
      %p82 = por %p80, %p81
      %p84 = scmp.ne.s32.totalorder %s67, %s83
      %p85 = scmp.eq.s32.totalorder %s19, 0
      %p86 = por %p84, %p85
      %s87 = ssub.s32 %s20, %s32
      %s88 = ssub.s32 %s21, %s28
      %s89 = sor.u32 %s87, %s88
      %p90 = scmp.eq.s32.totalorder %s89, 0
      %s92 = sadd.s32 %s91, 1
      %s93 = scalar_select %p90, %s91, %s92
      %p96 = pneg %p90
      %p97 = scmp.eq.s32.totalorder %s13, 1
      %p98 = por %p96, %p97
      %p99 = scmp.ne.s32.totalorder %s91, %s94
      %p100 = scmp.eq.s32.totalorder %s13, 0
      %p101 = por %p99, %p100
      %p102 = scmp.ne.s32.totalorder %s91, %s94
      %p103 = scmp.eq.s32.totalorder %s18, 1
      %p104 = por %p102, %p103
      %p105 = scmp.ne.s32.totalorder %s94, %s95
      %p106 = scmp.eq.s32.totalorder %s18, 0
      %p107 = por %p105, %p106
      %p108 = scmp.ne.s32.totalorder %s94, %s95
      %p109 = scmp.eq.s32.totalorder %s19, 1
      %p110 = por %p108, %p109
      %p112 = scmp.ne.s32.totalorder %s95, %s111
      %p113 = scmp.eq.s32.totalorder %s19, 0
      %p114 = por %p112, %p113
      %s115 = ssub.s32 %s20, %s32
      %p116 = scmp.eq.s32.totalorder %s115, 0
      %s118 = sadd.s32 %s117, 1
      %s119 = scalar_select %p116, %s117, %s118
      %p122 = pneg %p116
      %p123 = scmp.eq.s32.totalorder %s13, 1
      %p124 = por %p122, %p123
      %p125 = scmp.ne.s32.totalorder %s117, %s120
      %p126 = scmp.eq.s32.totalorder %s13, 0
      %p127 = por %p125, %p126
      %p128 = scmp.ne.s32.totalorder %s117, %s120
      %p129 = scmp.eq.s32.totalorder %s18, 1
      %p130 = por %p128, %p129
      %p131 = scmp.ne.s32.totalorder %s120, %s121
      %p132 = scmp.eq.s32.totalorder %s18, 0
      %p133 = por %p131, %p132
      %p134 = scmp.ne.s32.totalorder %s120, %s121
      %p135 = scmp.eq.s32.totalorder %s19, 1
      %p136 = por %p134, %p135
      %p138 = scmp.ne.s32.totalorder %s121, %s137
      %p139 = scmp.eq.s32.totalorder %s19, 0
      %p140 = por %p138, %p139
      %p141 = scmp.le.s32.totalorder 1, %s13
      %p142 = scmp.lt.s32.totalorder %s13, 3
      %p143 = pnand %p141, %p142
      %p144 = pneg %p143
      // Predicated region
      $region9: #{label_smoothing.1} parent=5 // pred_check
        _
      $region10: #{label_smoothing.1} parent=5 // pred_check_branch
        %146 = sbr.rel (%p143) target = $region12
      $region11: #{label_smoothing.1} parent=5 // pred_region
        %s147 = ssub.s32 %s13, 1
      $region12: #{label_smoothing.1} parent=5 // pred_fallthru
        _
      %p148 = scmp.lt.s32.totalorder %s13, 2
      // Predicated region
      $region13: #{label_smoothing.1} parent=5 // pred_check
        %p149 = pneg %p148
      $region14: #{label_smoothing.1} parent=5 // pred_check_branch
        %151 = sbr.rel (%p149) target = $region16
      $region15: #{label_smoothing.1} parent=5 // pred_region
        // Predicated region
        $region17: #{label_smoothing.1} parent=15 // pred_check
          %p152 = pneg %p45
        $region18: #{label_smoothing.1} parent=15 // pred_check_branch
          %154 = sbr.rel (%p152) target = $region20
        $region19: #{label_smoothing.1} parent=15 // pred_region
          %s155 = smul.u32 4, %s20
          %p156 = scmp.lt.s32.totalorder %s155, 7
          %s157 = scalar_select %p156, %s155, 7
          %s158 = smul.addr %s157, 8
          %s159 = scalar_lea.vmem %s0, %s158
          %s160 = smul.u32 4, %s20
        $region20: #{label_smoothing.1} parent=15 // pred_fallthru
          _
        // Predicated region
        $region21: #{label_smoothing.1} parent=15 // pred_check
          %p161 = pneg %p73
        $region22: #{label_smoothing.1} parent=15 // pred_check_branch
          %163 = sbr.rel (%p161) target = $region24
        $region23: #{label_smoothing.1} parent=15 // pred_region
          %s164 = smul.u32 4, %s20
          %p165 = scmp.lt.s32.totalorder %s164, 7
          %s166 = scalar_select %p165, %s164, 7
          %p167 = scmp.lt.s32.totalorder %s21, 0
          %s168 = scalar_select %p167, %s21, 0
          %s169 = sadd.s32 %s168, %s166
          %s170 = smul.addr %s169, 8
          %s171 = scalar_lea.vmem %s1, %s170
          %s172 = smul.u32 4, %s20
        $region24: #{label_smoothing.1} parent=15 // pred_fallthru
          _
      $region16: #{label_smoothing.1} parent=5 // pred_fallthru
        _
      %p173 = scmp.le.s32.totalorder 1, %s13
      %p174 = scmp.lt.s32.totalorder %s13, 3
      %p175 = pnand %p173, %p174
      %p176 = pneg %p175
      // Predicated region
      $region25: #{label_smoothing.1} parent=5 // pred_check
        _
      $region26: #{label_smoothing.1} parent=5 // pred_check_branch
        %178 = sbr.rel (%p175) target = $region28
      $region27: #{label_smoothing.1} parent=5 // pred_region
        %s179 = ssub.s32 %s13, 1
        %s180 = smul.u32 4, %s22
        %p181 = scmp.lt.s32.totalorder %s180, 7
        %s182 = scalar_select %p181, %s180, 7
        %s183 = smul.addr %s182, 8
        %s184 = scalar_lea.vmem %s0, %s183
        %p185 = pneg %p51
        %p186 = pneg %p48
        %s187 = smul.u32 4, %s22
        %p188 = scmp.lt.s32.totalorder %s187, 7
        %s189 = scalar_select %p188, %s187, 7
        %p190 = scmp.lt.s32.totalorder %s23, 0
        %s191 = scalar_select %p190, %s23, 0
        %s192 = sadd.s32 %s191, %s189
        %s193 = smul.addr %s192, 8
        %s194 = scalar_lea.vmem %s1, %s193
        %p195 = pneg %p79
        %p196 = pneg %p76
        %p197 = pneg %p107
        %p198 = pneg %p104
        %s199 = sand.u32 %s94, 1
        %s200 = scalar_lea.sflag [#allocation4], %s199
        %s201 = sand.u32 %s94, 1
        %s202 = smul.addr %s201, 32
        %s203 = scalar_lea.vmem [#allocation3], %s202
        %p204 = pneg %p133
        %p205 = pneg %p130
        %s206 = smul.u32 4, %s22
        %p207 = scmp.lt.s32.totalorder %s206, 7
        %s208 = scalar_select %p207, %s206, 7
        %s209 = smul.addr %s208, 8
        %s210 = scalar_lea.vmem %s3, %s209
        %s211 = smul.u32 4, %s22
        %p212 = scmp.lt.s32.totalorder %s211, 7
        %s213 = scalar_select %p212, %s211, 7
        %s214 = smul.addr %s213, 8
        %s215 = scalar_lea.vmem %s0, %s214
        %s216 = smul.u32 4, %s22
        %s217 = smul.u32 4, %s22
        %p218 = scmp.lt.s32.totalorder %s217, 7
        %s219 = scalar_select %p218, %s217, 7
        %p220 = scmp.lt.s32.totalorder %s23, 0
        %s221 = scalar_select %p220, %s23, 0
        %s222 = sadd.s32 %s221, %s219
        %s223 = smul.addr %s222, 8
        %s224 = scalar_lea.vmem %s1, %s223
        %s225 = smul.u32 4, %s22
        %s226 = smul.u32 4, %s22
        %s227 = smul.u32 4, %s22
        %p228 = scmp.lt.s32.totalorder %s227, 7
        %s229 = scalar_select %p228, %s227, 7
        %s230 = smul.addr %s229, 8
        %s231 = scalar_lea.vmem %s3, %s230
        %s232 = smul.u32 4, %s22
        %v233 = vld [vmem:[%s215] sm:$0xff]
        %v234 = vld [vmem:[%s215 + $0x8] sm:$0xff]
        %v235 = vld [vmem:[%s215 + $0x10] sm:$0xff]
        %v236 = vld [vmem:[%s215 + $0x18] sm:$0xff]
        %v237 = vld [vmem:[%s224] sm:$0xff]
        %v238 = vld [vmem:[%s224 + $0x8] sm:$0xff]
        %v239 = vld [vmem:[%s224 + $0x10] sm:$0xff]
        %v240 = vld [vmem:[%s224 + $0x18] sm:$0xff]
        %s241 = smul.u32 %s23, 128
        %v242 = vstv %s241
        %v243 = vsub.s32 %v233, %v242
        %v244 = vsub.s32 %v234, %v242
        %v245 = vsub.s32 %v235, %v242
        %v246 = vsub.s32 %v236, %v242
        %s247 = ssub.s32 0, %s241
        %vm248 = vcmp.ne.s32.totalorder %v233, 0
        %vm249 = vcmp.ne.s32.totalorder %v234, 0
        %vm250 = vcmp.ne.s32.totalorder %v235, 0
        %vm251 = vcmp.ne.s32.totalorder %v236, 0
        %v252 = vlaneseq
        %v253 = vand.u32 %v252, 127
        %254 = vset.pattern.permute.xlu0 0
        %255 = vperm.xlu0 %254, %v243
        %v256 = vpop.permute.xlu0 %255
        %257 = vset.pattern.permute.xlu0 0
        %258 = vperm.xlu0 %257, %v244
        %v259 = vpop.permute.xlu0 %258
        %260 = vset.pattern.permute.xlu0 0
        %261 = vperm.xlu0 %260, %v245
        %v262 = vpop.permute.xlu0 %261
        %263 = vset.pattern.permute.xlu0 0
        %264 = vperm.xlu0 %263, %v246
        %v265 = vpop.permute.xlu0 %264
        %vm266 = vcmp.eq.s32.totalorder %v253, %v256
        %vm267 = vcmp.eq.s32.totalorder %v253, %v259
        %vm268 = vcmp.eq.s32.totalorder %v253, %v262
        %vm269 = vcmp.eq.s32.totalorder %v253, %v265
        %v270 = vstv %s247
        %vm271 = vcmp.ne.s32.totalorder %v253, %v270
        %v272 = vsel %vm248, 1, 0
        %v273 = vsel %vm249, 1, 0
        %v274 = vsel %vm250, 1, 0
        %v275 = vsel %vm251, 1, 0
        %276 = vset.pattern.permute.xlu0 0
        %277 = vperm.xlu0 %276, %v272
        %v278 = vpop.permute.xlu0 %277
        %279 = vset.pattern.permute.xlu0 0
        %280 = vperm.xlu0 %279, %v273
        %v281 = vpop.permute.xlu0 %280
        %282 = vset.pattern.permute.xlu0 0
        %283 = vperm.xlu0 %282, %v274
        %v284 = vpop.permute.xlu0 %283
        %285 = vset.pattern.permute.xlu0 0
        %286 = vperm.xlu0 %285, %v275
        %v287 = vpop.permute.xlu0 %286
        %vm288 = vcmp.eq.s32.totalorder %v278, 1
        %vm289 = vcmp.eq.s32.totalorder %v281, 1
        %vm290 = vcmp.eq.s32.totalorder %v284, 1
        %vm291 = vcmp.eq.s32.totalorder %v287, 1
        %vm292 = vmand %vm288, %vm271
        %vm293 = vmand %vm289, %vm271
        %vm294 = vmand %vm290, %vm271
        %vm295 = vmand %vm291, %vm271
        %v296 = vsel %vm266, 0.9, 0.0007936508
        %v297 = vsel %vm267, 0.9, 0.0007936508
        %v298 = vsel %vm268, 0.9, 0.0007936508
        %v299 = vsel %vm269, 0.9, 0.0007936508
        %v300 = vsel %vm292, %v296, 0.0
        %v301 = vsel %vm293, %v297, 0.0
        %v302 = vsel %vm294, %v298, 0.0
        %v303 = vsel %vm295, %v299, 0.0
        %304 = vst [vmem:[%s203] sm:$0xff] %v300
        %305 = vst [vmem:[%s203 + $0x8] sm:$0xff] %v301
        %306 = vst [vmem:[%s203 + $0x10] sm:$0xff] %v302
        %307 = vst [vmem:[%s203 + $0x18] sm:$0xff] %v303
        %v308 = vmul.f32 %v300, %v237
        %v309 = vmul.f32 %v301, %v238
        %v310 = vmul.f32 %v302, %v239
        %v311 = vmul.f32 %v303, %v240
        %v312 = vsel %vm292, %v308, 0.0
        %v313 = vsel %vm293, %v309, 0.0
        %v314 = vsel %vm294, %v310, 0.0
        %v315 = vsel %vm295, %v311, 0.0
        %p316 = scmp.eq.s32.totalorder %s23, 0
        // Predicated region
        $region29: #{label_smoothing.1} parent=27 // pred_check
          %p317 = pneg %p316
        $region30: #{label_smoothing.1} parent=27 // pred_check_branch
          %319 = sbr.rel (%p317) target = $region32
        $region31: #{label_smoothing.1} parent=27 // pred_region
          %320 = vst [vmem:[#allocation2] sm:$0xff] 0.0
          %321 = vst [vmem:[#allocation2 + $0x8] sm:$0xff] 0.0
          %322 = vst [vmem:[#allocation2 + $0x10] sm:$0xff] 0.0
          %323 = vst [vmem:[#allocation2 + $0x18] sm:$0xff] 0.0
        $region32: #{label_smoothing.1} parent=27 // pred_fallthru
          _
        %v324 = vld [vmem:[#allocation2] sm:$0xff]
        %v325 = vld [vmem:[#allocation2 + $0x8] sm:$0xff]
        %v326 = vld [vmem:[#allocation2 + $0x10] sm:$0xff]
        %v327 = vld [vmem:[#allocation2 + $0x18] sm:$0xff]
        %v328 = vadd.f32 %v324, %v312
        %v329 = vadd.f32 %v325, %v313
        %v330 = vadd.f32 %v326, %v314
        %v331 = vadd.f32 %v327, %v315
        %332 = vst [vmem:[#allocation2] sm:$0xff] %v328
        %333 = vst [vmem:[#allocation2 + $0x8] sm:$0xff] %v329
        %334 = vst [vmem:[#allocation2 + $0x10] sm:$0xff] %v330
        %335 = vst [vmem:[#allocation2 + $0x18] sm:$0xff] %v331
        // Predicated region
        $region33: #{label_smoothing.1} parent=27 // pred_check
          %p336 = pneg %p316
        $region34: #{label_smoothing.1} parent=27 // pred_check_branch
          %338 = sbr.rel (%p336) target = $region36
        $region35: #{label_smoothing.1} parent=27 // pred_region
          %v339 = vld [vmem:[#allocation2] sm:$0xff]
          %v340 = vld [vmem:[#allocation2 + $0x8] sm:$0xff]
          %v341 = vld [vmem:[#allocation2 + $0x10] sm:$0xff]
          %v342 = vld [vmem:[#allocation2 + $0x18] sm:$0xff]
          %343 = vadd.xlane.f32.xlu0 %v339
          %v344 = vpop.xlane.xlu0 %343
          %345 = vadd.xlane.f32.xlu0 %v340
          %v346 = vpop.xlane.xlu0 %345
          %347 = vadd.xlane.f32.xlu0 %v341
          %v348 = vpop.xlane.xlu0 %347
          %349 = vadd.xlane.f32.xlu0 %v342
          %v350 = vpop.xlane.xlu0 %349
          %v351 = vsel %vm248, -0.8087112, 0.0
          %v352 = vsel %vm249, -0.8087112, 0.0
          %v353 = vsel %vm250, -0.8087112, 0.0
          %v354 = vsel %vm251, -0.8087112, 0.0
          %v355 = vsub.f32 %v351, %v344
          %v356 = vsub.f32 %v352, %v346
          %v357 = vsub.f32 %v353, %v348
          %v358 = vsub.f32 %v354, %v350
          %vm359 = vcmask 7168
          %360 = vst.msk [vmem:[%s231] sm:$0xff] %vm359, %v355
          %361 = vst.msk [vmem:[%s231 + $0x8] sm:$0xff] %vm359, %v356
          %362 = vst.msk [vmem:[%s231 + $0x10] sm:$0xff] %vm359, %v357
          %363 = vst.msk [vmem:[%s231 + $0x18] sm:$0xff] %vm359, %v358
        $region36: #{label_smoothing.1} parent=27 // pred_fallthru
          _
        %s364 = sand.u32 %s94, 1
        %s365 = scalar_lea.sflag [#allocation4], %s364
        %s366 = sand.u32 %s94, 1
        %s367 = smul.addr %s366, 32
        %s368 = scalar_lea.vmem [#allocation3], %s367
        %s369 = smul.u32 4, %s22
        %p370 = scmp.lt.s32.totalorder %s369, 7
        %s371 = scalar_select %p370, %s369, 7
        %s372 = smul.addr %s371, 8
        %s373 = scalar_lea.vmem %s3, %s372
        // Predicated region
        $region37: #{label_smoothing.1} parent=27 // pred_check
          %p374 = pneg %p104
        $region38: #{label_smoothing.1} parent=27 // pred_check_branch
          %376 = sbr.rel (%p374) target = $region40
        $region39: #{label_smoothing.1} parent=27 // pred_region
          %s377 = smul.u32 4, %s22
          %s379 = ssub.s32 512, 512
          %380 = vsyncadd %s365, %s379
          %s381 = sadd.s32 %s23, %s377
          %s382 = smul.addr %s381, 128
          %s383 = scalar_lea.hbm %s2, %s382
          %s384 = sshll.u32 %s368, 4
          %s385 = int_to_ptr.vmem [resolvable:$true] %s384
          %390 = dma.vmem_to_hbm [thread:$0]  %s385, 512, %s383, %s365, 128, 128, 8
        $region40: #{label_smoothing.1} parent=27 // pred_fallthru
          _
        // Predicated region
        $region41: #{label_smoothing.1} parent=27 // pred_check
          %p391 = pneg %p130
        $region42: #{label_smoothing.1} parent=27 // pred_check_branch
          %393 = sbr.rel (%p391) target = $region44
        $region43: #{label_smoothing.1} parent=27 // pred_region
          %s394 = smul.u32 4, %s22
        $region44: #{label_smoothing.1} parent=27 // pred_fallthru
          _
      $region28: #{label_smoothing.1} parent=5 // pred_fallthru
        _
      %p395 = scmp.le.s32.totalorder 2, %s13
      // Predicated region
      $region45: #{label_smoothing.1} parent=5 // pred_check
        %p396 = pneg %p395
      $region46: #{label_smoothing.1} parent=5 // pred_check_branch
        %398 = sbr.rel (%p396) target = $region48
      $region47: #{label_smoothing.1} parent=5 // pred_region
        %s399 = ssub.s32 %s13, 2
        // Predicated region
        $region49: #{label_smoothing.1} parent=47 // pred_check
          %p400 = pneg %p110
        $region50: #{label_smoothing.1} parent=47 // pred_check_branch
          %402 = sbr.rel (%p400) target = $region52
        $region51: #{label_smoothing.1} parent=47 // pred_region
          %s403 = sand.u32 %s95, 1
          %s404 = scalar_lea.sflag [#allocation4], %s403
          %s405 = sand.u32 %s95, 1
          %s406 = smul.addr %s405, 32
          %s407 = scalar_lea.vmem [#allocation3], %s406
          %408 = dma.done %s404, 512
        $region52: #{label_smoothing.1} parent=47 // pred_fallthru
          _
        // Predicated region
        $region53: #{label_smoothing.1} parent=47 // pred_check
          %p409 = pneg %p136
        $region54: #{label_smoothing.1} parent=47 // pred_check_branch
          %411 = sbr.rel (%p409) target = $region56
        $region55: #{label_smoothing.1} parent=47 // pred_region
          %s412 = smul.u32 4, %s24
          %p413 = scmp.lt.s32.totalorder %s412, 7
          %s414 = scalar_select %p413, %s412, 7
          %s415 = smul.addr %s414, 8
          %s416 = scalar_lea.vmem %s3, %s415
        $region56: #{label_smoothing.1} parent=47 // pred_fallthru
          _
      $region48: #{label_smoothing.1} parent=5 // pred_fallthru
        _
    $region6: #{label_smoothing.1} parent=1 // loop_footer
      %s17 = sadd.s32 1, %s13
    $region7: #{label_smoothing.1} parent=1 // loop_footer_branch
      %12 = sbr.rel target = $region3
    $region8: #{label_smoothing.1} parent=1 // loop_exit
      _
    %417 = vsyncpa [#allocation4], 1
    %s418 = scalar_lea.sflag [#allocation4], 1
    %419 = vsyncpa %s418, 1

</llo_original>
